<compile_context>
chip_gen: v6e
topology: v6e:2x2x1
jax: 0.10.0
libtpu: 0.0.40
codegen_flags: <defaults>
</compile_context>

<pallas_src>
import functools
import math

import jax
import jax.numpy as jnp
from jax.experimental import pallas as pl
from jax.experimental.pallas import tpu as pltpu

IN_DIM = 2
HIDDEN = 50
OUT_DIM = 4
NUM_LAYERS = 5
PAD = 128          # padded feature width (sublane axis of h^T)
BIAS_COLS = 8      # bias stack padded to 8 columns (cols 5..7 unused zeros)
LANE = 128         # batch-lane granularity of the transposed layout


def mlp_kernel(zt_ref, w1t_ref, wrt_ref, bt_ref, out_ref):
    """Fused 5-layer MLP for one transposed batch tile.

    zt_ref : (2, T)         f32 inputs, transposed (features on sublanes)
    w1t_ref: (128, 2)       f32 layer-1 weight, transposed + zero-padded
    wrt_ref: (4, 128, 128)  bf16 transposed weights W_l^T for layers 2..5
    bt_ref : (128, 8)       f32, column l = bias of layer l+1 (cols 5..7 zero)
    out_ref: (4, T)         f32 logits, transposed
    """
    zt = zt_ref[...]          # (2, T) f32
    w1t = w1t_ref[...]        # (128, 2) f32
    bt = bt_ref[...]          # (128, 8) f32

    # Layer 1 (K=2): VPU outer product in f32 (skip the MXU round trip).
    h = (w1t[:, 0:1] * zt[0:1, :]
         + w1t[:, 1:2] * zt[1:2, :]
         + bt[:, 0:1])
    h = jnp.maximum(h, 0.0)                               # (128, T) f32

    # Layers 2..4: bf16 128x128 MXU matmuls with f32 accumulation;
    # bias add + ReLU stay in f32 on the VPU.
    for l in range(3):
        h = jnp.dot(wrt_ref[l], h.astype(jnp.bfloat16),
                    preferred_element_type=jnp.float32)
        h = jnp.maximum(h + bt[:, l + 1:l + 2], 0.0)

    # Layer 5 (no ReLU): only rows 0..3 hold real logits.
    h = jnp.dot(wrt_ref[3], h.astype(jnp.bfloat16),
                preferred_element_type=jnp.float32)
    out_ref[...] = (h[:OUT_DIM, :] + bt[:OUT_DIM, 4:5]).astype(out_ref.dtype)


def _choose_tile(b_rounded, batch_tile):
    """Batch-lane tile: multiple of 128, >=2 grid steps when possible (v7x
    dual TensorCore), shrunk when dead-row padding would exceed ~25%."""
    tile = min(batch_tile, b_rounded)
    if b_rounded >= 2 * LANE:
        half = -(-(b_rounded // 2) // LANE) * LANE
        tile = min(tile, half)
    tile = max(LANE, (tile // LANE) * LANE)
    while tile > LANE:
        padded = -(-b_rounded // tile) * tile
        if (padded - b_rounded) * 4 <= padded:
            break
        tile -= LANE
    return tile


@functools.partial(jax.jit, static_argnames=("batch_tile",))
def expert_model_forward(z, packed_params, *, batch_tile=2048):
    """z: (B, 2) float32.  packed_params: (w1t, wrt_bf16, bt)."""
    w1t, wrt, bt = packed_params
    B = z.shape[0]
    assert z.shape[1] == IN_DIM

    b_rounded = -(-B // LANE) * LANE
    tile = _choose_tile(b_rounded, batch_tile)
    b_padded = -(-b_rounded // tile) * tile

    # Lane-dense transposed input: features on sublanes, batch on lanes.
    zt = jnp.zeros((IN_DIM, b_padded), jnp.float32).at[:, :B].set(z.T)

    out_t = pl.pallas_call(
        mlp_kernel,
        out_shape=jax.ShapeDtypeStruct((OUT_DIM, b_padded), jnp.float32),
        grid_spec=pl.GridSpec(
            grid=(b_padded // tile,),
            in_specs=[
                pl.BlockSpec((IN_DIM, tile), lambda i: (0, i)),
                pl.BlockSpec(w1t.shape, lambda i: (0, 0)),
                pl.BlockSpec(wrt.shape, lambda i: (0, 0, 0)),
                pl.BlockSpec(bt.shape, lambda i: (0, 0)),
            ],
            out_specs=pl.BlockSpec((OUT_DIM, tile), lambda i: (0, i)),
        ),
        compiler_params=pltpu.CompilerParams(
            dimension_semantics=("parallel",)),
    )(zt, w1t, wrt, bt)

    # Transpose back to (B, 4); only 4*B floats, negligible traffic.
    return out_t[:, :B].T


def init_params(key):
    """Deterministic init mimicking PyTorch nn.Linear default:
    U(-1/sqrt(fan_in), +1/sqrt(fan_in)) for both weight and bias.
    Returns unpadded (W (in,out), b (out,)) pairs."""
    dims = [(IN_DIM, HIDDEN), (HIDDEN, HIDDEN), (HIDDEN, HIDDEN),
            (HIDDEN, HIDDEN), (HIDDEN, OUT_DIM)]
    params = []
    for (fan_in, fan_out) in dims:
        key, kw, kb = jax.random.split(key, 3)
        bound = 1.0 / math.sqrt(fan_in)
        w = jax.random.uniform(kw, (fan_in, fan_out), jnp.float32,
                               minval=-bound, maxval=bound)
        b = jax.random.uniform(kb, (fan_out,), jnp.float32,
                               minval=-bound, maxval=bound)
        params.append((w, b))
    return params


def pack_params(params):
    """Transpose, zero-pad features to 128, and consolidate into 3 operands.
    Layers 2..5 weights are stored in bf16 (MXU-native); layer-1 weight and
    all biases stay f32 (VPU path)."""
    (w1, b1), *rest = params
    w1t = jnp.zeros((PAD, IN_DIM), jnp.float32).at[:HIDDEN, :].set(w1.T)
    wrt = jnp.zeros((NUM_LAYERS - 1, PAD, PAD), jnp.float32)
    bt = jnp.zeros((PAD, BIAS_COLS), jnp.float32).at[:HIDDEN, 0].set(b1)
    for l, (w, b) in enumerate(rest):
        wrt = wrt.at[l, :w.shape[1], :w.shape[0]].set(w.T)   # W^T
        bt = bt.at[:b.shape[0], l + 1].set(b)
    return w1t, wrt.astype(jnp.bfloat16), bt


def reference_forward(z, params, *, matmul_dtype=jnp.float32):
    """Pure-JAX reference.  matmul_dtype=bf16 emulates the kernel's
    quantization (layer 1 stays f32, like the kernel's VPU path)."""
    h = z
    for idx, (w, b) in enumerate(params):
        if idx == 0 or matmul_dtype == jnp.float32:
            h = h @ w + b
        else:
            h = jnp.dot(h.astype(matmul_dtype), w.astype(matmul_dtype),
                        preferred_element_type=jnp.float32) + b
        if idx < len(params) - 1:
            h = jnp.maximum(h, 0.0)
    return h


if __name__ == "__main__":
    key = jax.random.PRNGKey(0)
    key, kz, kz2 = jax.random.split(key, 3)

    params = init_params(key)
    packed = pack_params(params)

    # Small batch: single 128-lane grid step.
    batch = 16
    z = jax.random.normal(kz, (batch, IN_DIM), jnp.float32)
    out = jax.block_until_ready(expert_model_forward(z, packed))
    assert out.shape == (batch, OUT_DIM)
    assert jnp.allclose(out, reference_forward(z, params, matmul_dtype=jnp.bfloat16),
                        atol=1e-2, rtol=1e-2), "mismatch vs bf16-matmul reference"
    assert jnp.allclose(out, reference_forward(z, params),
                        atol=5e-2, rtol=5e-2), "mismatch vs f32 reference"

    # Larger, non-multiple batch: exercises the 2-step grid (v7x dual-TC path)
    # and the batch-padding logic.
    batch2 = 300
    z2 = jax.random.normal(kz2, (batch2, IN_DIM), jnp.float32)
    out2 = jax.block_until_ready(expert_model_forward(z2, packed))
    assert out2.shape == (batch2, OUT_DIM)
    assert jnp.allclose(out2, reference_forward(z2, params, matmul_dtype=jnp.bfloat16),
                        atol=1e-2, rtol=1e-2), "mismatch vs bf16-matmul reference (B=300)"
    assert jnp.allclose(out2, reference_forward(z2, params),
                        atol=5e-2, rtol=5e-2), "mismatch vs f32 reference (B=300)"

    print("KERNEL_OK")
</pallas_src>

<mosaic_0001>
module attributes {stable_mosaic.version = 11 : i64} {
  func.func @mlp_kernel(%arg0: i32, %arg1: memref<2x128xf32, #tpu.memory_space<vmem>>, %arg2: memref<128x2xf32, #tpu.memory_space<vmem>>, %arg3: memref<4x128x128xbf16, #tpu.memory_space<vmem>>, %arg4: memref<128x8xf32, #tpu.memory_space<vmem>>, %arg5: memref<4x128xf32, #tpu.memory_space<vmem>>) attributes {dimension_semantics = [#tpu.dimension_semantics<parallel>], iteration_bounds = array<i64: 1>, scalar_prefetch = 0 : i64, scratch_operands = 0 : i64, tpu.core_type = #tpu.core_type<tc>, window_params = [{transform_indices = @transform_0, window_bounds = array<i64: 2, 128>}, {pipeline_mode = #tpu.pipeline_mode<synchronous>, transform_indices = @transform_1, window_bounds = array<i64: 128, 2>}, {pipeline_mode = #tpu.pipeline_mode<synchronous>, transform_indices = @transform_2, window_bounds = array<i64: 4, 128, 128>}, {pipeline_mode = #tpu.pipeline_mode<synchronous>, transform_indices = @transform_3, window_bounds = array<i64: 128, 8>}, {transform_indices = @transform_4, window_bounds = array<i64: 4, 128>}]} {
    %c0 = arith.constant 0 : index
    %c0_0 = arith.constant 0 : index
    %0 = vector.load %arg1[%c0, %c0_0] : memref<2x128xf32, #tpu.memory_space<vmem>>, vector<2x128xf32>
    %c0_1 = arith.constant 0 : index
    %c0_2 = arith.constant 0 : index
    %1 = vector.load %arg2[%c0_1, %c0_2] : memref<128x2xf32, #tpu.memory_space<vmem>>, vector<128x2xf32>
    %c0_3 = arith.constant 0 : index
    %c0_4 = arith.constant 0 : index
    %2 = vector.load %arg4[%c0_3, %c0_4] : memref<128x8xf32, #tpu.memory_space<vmem>>, vector<128x8xf32>
    %3 = vector.extract_strided_slice %1 {offsets = [0, 0], sizes = [128, 1], strides = [1, 1]} : vector<128x2xf32> to vector<128x1xf32>
    %4 = vector.extract_strided_slice %0 {offsets = [0, 0], sizes = [1, 128], strides = [1, 1]} : vector<2x128xf32> to vector<1x128xf32>
    %5 = vector.broadcast %3 : vector<128x1xf32> to vector<128x128xf32>
    %6 = vector.broadcast %4 : vector<1x128xf32> to vector<128x128xf32>
    %7 = arith.mulf %5, %6 : vector<128x128xf32>
    %8 = vector.extract_strided_slice %1 {offsets = [0, 1], sizes = [128, 1], strides = [1, 1]} : vector<128x2xf32> to vector<128x1xf32>
    %9 = vector.extract_strided_slice %0 {offsets = [1, 0], sizes = [1, 128], strides = [1, 1]} : vector<2x128xf32> to vector<1x128xf32>
    %10 = vector.broadcast %8 : vector<128x1xf32> to vector<128x128xf32>
    %11 = vector.broadcast %9 : vector<1x128xf32> to vector<128x128xf32>
    %12 = arith.mulf %10, %11 : vector<128x128xf32>
    %13 = arith.addf %7, %12 : vector<128x128xf32>
    %14 = vector.extract_strided_slice %2 {offsets = [0, 0], sizes = [128, 1], strides = [1, 1]} : vector<128x8xf32> to vector<128x1xf32>
    %15 = vector.broadcast %14 : vector<128x1xf32> to vector<128x128xf32>
    %16 = arith.addf %13, %15 : vector<128x128xf32>
    %cst = arith.constant 0.000000e+00 : f32
    %17 = vector.broadcast %cst : f32 to vector<128x128xf32>
    %18 = arith.maximumf %16, %17 : vector<128x128xf32>
    %c0_5 = arith.constant 0 : index
    %c0_6 = arith.constant 0 : index
    %c0_7 = arith.constant 0 : index
    %19 = vector.load %arg3[%c0_5, %c0_6, %c0_7] : memref<4x128x128xbf16, #tpu.memory_space<vmem>>, vector<1x128x128xbf16>
    %20 = vector.shape_cast %19 : vector<1x128x128xbf16> to vector<128x128xbf16>
    %21 = arith.truncf %18 : vector<128x128xf32> to vector<128x128xbf16>
    %cst_8 = arith.constant dense<0.000000e+00> : vector<128x128xf32>
    %22 = tpu.matmul %20, %21, %cst_8 {dimension_numbers = #tpu.dot_dimension_numbers<[1], [0], [0], [1], [0, 0, 1, 1], [], []>} : vector<128x128xbf16>, vector<128x128xbf16>, vector<128x128xf32> -> vector<128x128xf32>
    %23 = vector.extract_strided_slice %2 {offsets = [0, 1], sizes = [128, 1], strides = [1, 1]} : vector<128x8xf32> to vector<128x1xf32>
    %24 = vector.broadcast %23 : vector<128x1xf32> to vector<128x128xf32>
    %25 = arith.addf %22, %24 : vector<128x128xf32>
    %cst_9 = arith.constant 0.000000e+00 : f32
    %26 = vector.broadcast %cst_9 : f32 to vector<128x128xf32>
    %27 = arith.maximumf %25, %26 : vector<128x128xf32>
    %c1 = arith.constant 1 : index
    %c0_10 = arith.constant 0 : index
    %c0_11 = arith.constant 0 : index
    %28 = vector.load %arg3[%c1, %c0_10, %c0_11] : memref<4x128x128xbf16, #tpu.memory_space<vmem>>, vector<1x128x128xbf16>
    %29 = vector.shape_cast %28 : vector<1x128x128xbf16> to vector<128x128xbf16>
    %30 = arith.truncf %27 : vector<128x128xf32> to vector<128x128xbf16>
    %cst_12 = arith.constant dense<0.000000e+00> : vector<128x128xf32>
    %31 = tpu.matmul %29, %30, %cst_12 {dimension_numbers = #tpu.dot_dimension_numbers<[1], [0], [0], [1], [0, 0, 1, 1], [], []>} : vector<128x128xbf16>, vector<128x128xbf16>, vector<128x128xf32> -> vector<128x128xf32>
    %32 = vector.extract_strided_slice %2 {offsets = [0, 2], sizes = [128, 1], strides = [1, 1]} : vector<128x8xf32> to vector<128x1xf32>
    %33 = vector.broadcast %32 : vector<128x1xf32> to vector<128x128xf32>
    %34 = arith.addf %31, %33 : vector<128x128xf32>
    %cst_13 = arith.constant 0.000000e+00 : f32
    %35 = vector.broadcast %cst_13 : f32 to vector<128x128xf32>
    %36 = arith.maximumf %34, %35 : vector<128x128xf32>
    %c2 = arith.constant 2 : index
    %c0_14 = arith.constant 0 : index
    %c0_15 = arith.constant 0 : index
    %37 = vector.load %arg3[%c2, %c0_14, %c0_15] : memref<4x128x128xbf16, #tpu.memory_space<vmem>>, vector<1x128x128xbf16>
    %38 = vector.shape_cast %37 : vector<1x128x128xbf16> to vector<128x128xbf16>
    %39 = arith.truncf %36 : vector<128x128xf32> to vector<128x128xbf16>
    %cst_16 = arith.constant dense<0.000000e+00> : vector<128x128xf32>
    %40 = tpu.matmul %38, %39, %cst_16 {dimension_numbers = #tpu.dot_dimension_numbers<[1], [0], [0], [1], [0, 0, 1, 1], [], []>} : vector<128x128xbf16>, vector<128x128xbf16>, vector<128x128xf32> -> vector<128x128xf32>
    %41 = vector.extract_strided_slice %2 {offsets = [0, 3], sizes = [128, 1], strides = [1, 1]} : vector<128x8xf32> to vector<128x1xf32>
    %42 = vector.broadcast %41 : vector<128x1xf32> to vector<128x128xf32>
    %43 = arith.addf %40, %42 : vector<128x128xf32>
    %cst_17 = arith.constant 0.000000e+00 : f32
    %44 = vector.broadcast %cst_17 : f32 to vector<128x128xf32>
    %45 = arith.maximumf %43, %44 : vector<128x128xf32>
    %c3 = arith.constant 3 : index
    %c0_18 = arith.constant 0 : index
    %c0_19 = arith.constant 0 : index
    %46 = vector.load %arg3[%c3, %c0_18, %c0_19] : memref<4x128x128xbf16, #tpu.memory_space<vmem>>, vector<1x128x128xbf16>
    %47 = vector.shape_cast %46 : vector<1x128x128xbf16> to vector<128x128xbf16>
    %48 = arith.truncf %45 : vector<128x128xf32> to vector<128x128xbf16>
    %cst_20 = arith.constant dense<0.000000e+00> : vector<128x128xf32>
    %49 = tpu.matmul %47, %48, %cst_20 {dimension_numbers = #tpu.dot_dimension_numbers<[1], [0], [0], [1], [0, 0, 1, 1], [], []>} : vector<128x128xbf16>, vector<128x128xbf16>, vector<128x128xf32> -> vector<128x128xf32>
    %50 = vector.extract_strided_slice %49 {offsets = [0, 0], sizes = [4, 128], strides = [1, 1]} : vector<128x128xf32> to vector<4x128xf32>
    %51 = vector.extract_strided_slice %2 {offsets = [0, 4], sizes = [4, 1], strides = [1, 1]} : vector<128x8xf32> to vector<4x1xf32>
    %52 = vector.broadcast %51 : vector<4x1xf32> to vector<4x128xf32>
    %53 = arith.addf %50, %52 : vector<4x128xf32>
    %c0_21 = arith.constant 0 : index
    %c0_22 = arith.constant 0 : index
    %54 = vector.load %arg5[%c0_21, %c0_22] : memref<4x128xf32, #tpu.memory_space<vmem>>, vector<4x128xf32>
    tpu.vector_store %arg5[%c0_21, %c0_22], %53 {strides = array<i32>} : memref<4x128xf32, #tpu.memory_space<vmem>>, vector<4x128xf32>,
    return
  }
  func.func @transform_0(%arg0: i32) -> (i32, i32) {
    %c0_i32 = arith.constant 0 : i32
    %c0_i32_0 = arith.constant 0 : i32
    return %c0_i32, %arg0 : i32, i32
  }
  func.func @transform_1(%arg0: i32) -> (i32, i32) {
    %c0_i32 = arith.constant 0 : i32
    %c0_i32_0 = arith.constant 0 : i32
    %c0_i32_1 = arith.constant 0 : i32
    return %c0_i32, %c0_i32_0 : i32, i32
  }
  func.func @transform_2(%arg0: i32) -> (i32, i32, i32) {
    %c0_i32 = arith.constant 0 : i32
    %c0_i32_0 = arith.constant 0 : i32
    %c0_i32_1 = arith.constant 0 : i32
    %c0_i32_2 = arith.constant 0 : i32
    return %c0_i32, %c0_i32_0, %c0_i32_1 : i32, i32, i32
  }
  func.func @transform_3(%arg0: i32) -> (i32, i32) {
    %c0_i32 = arith.constant 0 : i32
    %c0_i32_0 = arith.constant 0 : i32
    %c0_i32_1 = arith.constant 0 : i32
    return %c0_i32, %c0_i32_0 : i32, i32
  }
  func.func @transform_4(%arg0: i32) -> (i32, i32) {
    %c0_i32 = arith.constant 0 : i32
    %c0_i32_0 = arith.constant 0 : i32
    return %c0_i32, %arg0 : i32, i32
  }
}

</mosaic_0001>

<llo_original>
// kernel: expert_model_forward.1
$region0: #{expert_model_forward.1}
  #allocation0 [shape = 'u32[]', space=smem, size = 0x4, offset = 0x4, fixed_abs, tag = 'smem constant byte address 0x4 - core index']
  #allocation1 [shape = 'u32[144,128]{1,0:T(1,128)}', space=vmem, size = 0x12000, scoped, tag = 'internal scratch']
  %s0 = inlined_call_operand.vmem [shape: f32[2,128], index: 0, kind: input, shape index: {}]
  %s1 = inlined_call_operand.vmem [shape: f32[128,2], index: 1, kind: input, shape index: {}]
  %s2 = inlined_call_operand.vmem [shape: bf16[4,128,128], index: 2, kind: input, shape index: {}]
  %s3 = inlined_call_operand.vmem [shape: f32[128,8], index: 3, kind: input, shape index: {}]
  %s4 = inlined_call_operand.vmem [shape: f32[4,128], index: 4, kind: output, shape index: {}]
  %s5 = sld [smem:[#allocation0]]
  $region26: #{expert_model_forward.1} parent=0
    _
  %s7 = ssub.s32 1, %s5
  %s8 = scalar_select 0, %s7, %s5
  // Predicated region
  $region2: #{expert_model_forward.1} parent=0 // pred_check
    _
  $region3: #{expert_model_forward.1} parent=0 // pred_check_branch
    %10 = sbr.rel (0) target = $region5
  $region4: #{expert_model_forward.1} parent=0 // pred_region
    _
  $region5: #{expert_model_forward.1} parent=0 // pred_fallthru
    _
  // Predicated region
  $region6: #{expert_model_forward.1} parent=0 // pred_check
    _
  $region7: #{expert_model_forward.1} parent=0 // pred_check_branch
    %12 = sbr.rel (0) target = $region9
  $region8: #{expert_model_forward.1} parent=0 // pred_region
    _
  $region9: #{expert_model_forward.1} parent=0 // pred_fallthru
    _
  // Predicated region
  $region10: #{expert_model_forward.1} parent=0 // pred_check
    _
  $region11: #{expert_model_forward.1} parent=0 // pred_check_branch
    %14 = sbr.rel (0) target = $region13
  $region12: #{expert_model_forward.1} parent=0 // pred_region
    _
  $region13: #{expert_model_forward.1} parent=0 // pred_fallthru
    _
  // Predicated region
  $region14: #{expert_model_forward.1} parent=0 // pred_check
    _
  $region15: #{expert_model_forward.1} parent=0 // pred_check_branch
    %16 = sbr.rel (0) target = $region17
  $region16: #{expert_model_forward.1} parent=0 // pred_region
    _
  $region17: #{expert_model_forward.1} parent=0 // pred_fallthru
    _
  %v18 = vld [vmem:[%s0] sm:$0x3]
  %v19 = vld [vmem:[%s1] sm:$0xff]
  %v20 = vld [vmem:[%s1 + $0x8] sm:$0xff]
  %v21 = vld [vmem:[%s1 + $0x10] sm:$0xff]
  %v22 = vld [vmem:[%s1 + $0x18] sm:$0xff]
  %v23 = vld [vmem:[%s1 + $0x20] sm:$0xff]
  %v24 = vld [vmem:[%s1 + $0x28] sm:$0xff]
  %v25 = vld [vmem:[%s1 + $0x30] sm:$0xff]
  %v26 = vld [vmem:[%s1 + $0x38] sm:$0xff]
  %v27 = vld [vmem:[%s1 + $0x40] sm:$0xff]
  %v28 = vld [vmem:[%s1 + $0x48] sm:$0xff]
  %v29 = vld [vmem:[%s1 + $0x50] sm:$0xff]
  %v30 = vld [vmem:[%s1 + $0x58] sm:$0xff]
  %v31 = vld [vmem:[%s1 + $0x60] sm:$0xff]
  %v32 = vld [vmem:[%s1 + $0x68] sm:$0xff]
  %v33 = vld [vmem:[%s1 + $0x70] sm:$0xff]
  %v34 = vld [vmem:[%s1 + $0x78] sm:$0xff]
  %v35 = vld [vmem:[%s3] sm:$0xff]
  %v36 = vld [vmem:[%s3 + $0x8] sm:$0xff]
  %v37 = vld [vmem:[%s3 + $0x10] sm:$0xff]
  %v38 = vld [vmem:[%s3 + $0x18] sm:$0xff]
  %v39 = vld [vmem:[%s3 + $0x20] sm:$0xff]
  %v40 = vld [vmem:[%s3 + $0x28] sm:$0xff]
  %v41 = vld [vmem:[%s3 + $0x30] sm:$0xff]
  %v42 = vld [vmem:[%s3 + $0x38] sm:$0xff]
  %v43 = vld [vmem:[%s3 + $0x40] sm:$0xff]
  %v44 = vld [vmem:[%s3 + $0x48] sm:$0xff]
  %v45 = vld [vmem:[%s3 + $0x50] sm:$0xff]
  %v46 = vld [vmem:[%s3 + $0x58] sm:$0xff]
  %v47 = vld [vmem:[%s3 + $0x60] sm:$0xff]
  %v48 = vld [vmem:[%s3 + $0x68] sm:$0xff]
  %v49 = vld [vmem:[%s3 + $0x70] sm:$0xff]
  %v50 = vld [vmem:[%s3 + $0x78] sm:$0xff]
  %52 = vset.pattern.permute.xlu0 0
  %53 = vperm.xlu0 %52, %v19
  %v54 = vpop.permute.xlu0 %53
  %57 = vset.pattern.permute.xlu0 0
  %58 = vperm.xlu0 %57, %v20
  %v59 = vpop.permute.xlu0 %58
  %62 = vset.pattern.permute.xlu0 0
  %63 = vperm.xlu0 %62, %v21
  %v64 = vpop.permute.xlu0 %63
  %67 = vset.pattern.permute.xlu0 0
  %68 = vperm.xlu0 %67, %v22
  %v69 = vpop.permute.xlu0 %68
  %72 = vset.pattern.permute.xlu0 0
  %73 = vperm.xlu0 %72, %v23
  %v74 = vpop.permute.xlu0 %73
  %77 = vset.pattern.permute.xlu0 0
  %78 = vperm.xlu0 %77, %v24
  %v79 = vpop.permute.xlu0 %78
  %82 = vset.pattern.permute.xlu0 0
  %83 = vperm.xlu0 %82, %v25
  %v84 = vpop.permute.xlu0 %83
  %87 = vset.pattern.permute.xlu0 0
  %88 = vperm.xlu0 %87, %v26
  %v89 = vpop.permute.xlu0 %88
  %92 = vset.pattern.permute.xlu0 0
  %93 = vperm.xlu0 %92, %v27
  %v94 = vpop.permute.xlu0 %93
  %97 = vset.pattern.permute.xlu0 0
  %98 = vperm.xlu0 %97, %v28
  %v99 = vpop.permute.xlu0 %98
  %102 = vset.pattern.permute.xlu0 0
  %103 = vperm.xlu0 %102, %v29
  %v104 = vpop.permute.xlu0 %103
  %107 = vset.pattern.permute.xlu0 0
  %108 = vperm.xlu0 %107, %v30
  %v109 = vpop.permute.xlu0 %108
  %112 = vset.pattern.permute.xlu0 0
  %113 = vperm.xlu0 %112, %v31
  %v114 = vpop.permute.xlu0 %113
  %117 = vset.pattern.permute.xlu0 0
  %118 = vperm.xlu0 %117, %v32
  %v119 = vpop.permute.xlu0 %118
  %122 = vset.pattern.permute.xlu0 0
  %123 = vperm.xlu0 %122, %v33
  %v124 = vpop.permute.xlu0 %123
  %127 = vset.pattern.permute.xlu0 0
  %128 = vperm.xlu0 %127, %v34
  %v129 = vpop.permute.xlu0 %128
  %v131 = vlaneseq
  %v132 = vshrl.u32 %v131, 7
  %v133 = vsub.s32 0, %v132
  %v134 = vrot.slane %v18, %v133
  %v135 = vmul.f32 %v54, %v134
  %v136 = vmul.f32 %v59, %v134
  %v137 = vmul.f32 %v64, %v134
  %v138 = vmul.f32 %v69, %v134
  %v139 = vmul.f32 %v74, %v134
  %v140 = vmul.f32 %v79, %v134
  %v141 = vmul.f32 %v84, %v134
  %v142 = vmul.f32 %v89, %v134
  %v143 = vmul.f32 %v94, %v134
  %v144 = vmul.f32 %v99, %v134
  %v145 = vmul.f32 %v104, %v134
  %v146 = vmul.f32 %v109, %v134
  %v147 = vmul.f32 %v114, %v134
  %v148 = vmul.f32 %v119, %v134
  %v149 = vmul.f32 %v124, %v134
  %v150 = vmul.f32 %v129, %v134
  %151 = vset.pattern.permute.xlu0 1
  %152 = vperm.xlu0 %151, %v19
  %v153 = vpop.permute.xlu0 %152
  %155 = vset.pattern.permute.xlu0 1
  %156 = vperm.xlu0 %155, %v20
  %v157 = vpop.permute.xlu0 %156
  %159 = vset.pattern.permute.xlu0 1
  %160 = vperm.xlu0 %159, %v21
  %v161 = vpop.permute.xlu0 %160
  %163 = vset.pattern.permute.xlu0 1
  %164 = vperm.xlu0 %163, %v22
  %v165 = vpop.permute.xlu0 %164
  %167 = vset.pattern.permute.xlu0 1
  %168 = vperm.xlu0 %167, %v23
  %v169 = vpop.permute.xlu0 %168
  %171 = vset.pattern.permute.xlu0 1
  %172 = vperm.xlu0 %171, %v24
  %v173 = vpop.permute.xlu0 %172
  %175 = vset.pattern.permute.xlu0 1
  %176 = vperm.xlu0 %175, %v25
  %v177 = vpop.permute.xlu0 %176
  %179 = vset.pattern.permute.xlu0 1
  %180 = vperm.xlu0 %179, %v26
  %v181 = vpop.permute.xlu0 %180
  %183 = vset.pattern.permute.xlu0 1
  %184 = vperm.xlu0 %183, %v27
  %v185 = vpop.permute.xlu0 %184
  %187 = vset.pattern.permute.xlu0 1
  %188 = vperm.xlu0 %187, %v28
  %v189 = vpop.permute.xlu0 %188
  %191 = vset.pattern.permute.xlu0 1
  %192 = vperm.xlu0 %191, %v29
  %v193 = vpop.permute.xlu0 %192
  %195 = vset.pattern.permute.xlu0 1
  %196 = vperm.xlu0 %195, %v30
  %v197 = vpop.permute.xlu0 %196
  %199 = vset.pattern.permute.xlu0 1
  %200 = vperm.xlu0 %199, %v31
  %v201 = vpop.permute.xlu0 %200
  %203 = vset.pattern.permute.xlu0 1
  %204 = vperm.xlu0 %203, %v32
  %v205 = vpop.permute.xlu0 %204
  %207 = vset.pattern.permute.xlu0 1
  %208 = vperm.xlu0 %207, %v33
  %v209 = vpop.permute.xlu0 %208
  %211 = vset.pattern.permute.xlu0 1
  %212 = vperm.xlu0 %211, %v34
  %v213 = vpop.permute.xlu0 %212
  %v215 = vlaneseq
  %v216 = vshrl.u32 %v215, 7
  %v217 = vsub.s32 1, %v216
  %v218 = vrot.slane %v18, %v217
  %v219 = vmul.f32 %v153, %v218
  %v220 = vmul.f32 %v157, %v218
  %v221 = vmul.f32 %v161, %v218
  %v222 = vmul.f32 %v165, %v218
  %v223 = vmul.f32 %v169, %v218
  %v224 = vmul.f32 %v173, %v218
  %v225 = vmul.f32 %v177, %v218
  %v226 = vmul.f32 %v181, %v218
  %v227 = vmul.f32 %v185, %v218
  %v228 = vmul.f32 %v189, %v218
  %v229 = vmul.f32 %v193, %v218
  %v230 = vmul.f32 %v197, %v218
  %v231 = vmul.f32 %v201, %v218
  %v232 = vmul.f32 %v205, %v218
  %v233 = vmul.f32 %v209, %v218
  %v234 = vmul.f32 %v213, %v218
  %v235 = vadd.f32 %v135, %v219
  %v236 = vadd.f32 %v136, %v220
  %v237 = vadd.f32 %v137, %v221
  %v238 = vadd.f32 %v138, %v222
  %v239 = vadd.f32 %v139, %v223
  %v240 = vadd.f32 %v140, %v224
  %v241 = vadd.f32 %v141, %v225
  %v242 = vadd.f32 %v142, %v226
  %v243 = vadd.f32 %v143, %v227
  %v244 = vadd.f32 %v144, %v228
  %v245 = vadd.f32 %v145, %v229
  %v246 = vadd.f32 %v146, %v230
  %v247 = vadd.f32 %v147, %v231
  %v248 = vadd.f32 %v148, %v232
  %v249 = vadd.f32 %v149, %v233
  %v250 = vadd.f32 %v150, %v234
  %252 = vset.pattern.permute.xlu0 0
  %253 = vperm.xlu0 %252, %v35
  %v254 = vpop.permute.xlu0 %253
  %257 = vset.pattern.permute.xlu0 0
  %258 = vperm.xlu0 %257, %v36
  %v259 = vpop.permute.xlu0 %258
  %262 = vset.pattern.permute.xlu0 0
  %263 = vperm.xlu0 %262, %v37
  %v264 = vpop.permute.xlu0 %263
  %267 = vset.pattern.permute.xlu0 0
  %268 = vperm.xlu0 %267, %v38
  %v269 = vpop.permute.xlu0 %268
  %272 = vset.pattern.permute.xlu0 0
  %273 = vperm.xlu0 %272, %v39
  %v274 = vpop.permute.xlu0 %273
  %277 = vset.pattern.permute.xlu0 0
  %278 = vperm.xlu0 %277, %v40
  %v279 = vpop.permute.xlu0 %278
  %282 = vset.pattern.permute.xlu0 0
  %283 = vperm.xlu0 %282, %v41
  %v284 = vpop.permute.xlu0 %283
  %287 = vset.pattern.permute.xlu0 0
  %288 = vperm.xlu0 %287, %v42
  %v289 = vpop.permute.xlu0 %288
  %292 = vset.pattern.permute.xlu0 0
  %293 = vperm.xlu0 %292, %v43
  %v294 = vpop.permute.xlu0 %293
  %297 = vset.pattern.permute.xlu0 0
  %298 = vperm.xlu0 %297, %v44
  %v299 = vpop.permute.xlu0 %298
  %302 = vset.pattern.permute.xlu0 0
  %303 = vperm.xlu0 %302, %v45
  %v304 = vpop.permute.xlu0 %303
  %307 = vset.pattern.permute.xlu0 0
  %308 = vperm.xlu0 %307, %v46
  %v309 = vpop.permute.xlu0 %308
  %312 = vset.pattern.permute.xlu0 0
  %313 = vperm.xlu0 %312, %v47
  %v314 = vpop.permute.xlu0 %313
  %317 = vset.pattern.permute.xlu0 0
  %318 = vperm.xlu0 %317, %v48
  %v319 = vpop.permute.xlu0 %318
  %322 = vset.pattern.permute.xlu0 0
  %323 = vperm.xlu0 %322, %v49
  %v324 = vpop.permute.xlu0 %323
  %327 = vset.pattern.permute.xlu0 0
  %328 = vperm.xlu0 %327, %v50
  %v329 = vpop.permute.xlu0 %328
  %v331 = vadd.f32 %v235, %v254
  %v332 = vadd.f32 %v236, %v259
  %v333 = vadd.f32 %v237, %v264
  %v334 = vadd.f32 %v238, %v269
  %v335 = vadd.f32 %v239, %v274
  %v336 = vadd.f32 %v240, %v279
  %v337 = vadd.f32 %v241, %v284
  %v338 = vadd.f32 %v242, %v289
  %v339 = vadd.f32 %v243, %v294
  %v340 = vadd.f32 %v244, %v299
  %v341 = vadd.f32 %v245, %v304
  %v342 = vadd.f32 %v246, %v309
  %v343 = vadd.f32 %v247, %v314
  %v344 = vadd.f32 %v248, %v319
  %v345 = vadd.f32 %v249, %v324
  %v346 = vadd.f32 %v250, %v329
  %v347 = vmax.f32 %v331, 0.0
  %v348 = vmax.f32 %v332, 0.0
  %v349 = vmax.f32 %v333, 0.0
  %v350 = vmax.f32 %v334, 0.0
  %v351 = vmax.f32 %v335, 0.0
  %v352 = vmax.f32 %v336, 0.0
  %v353 = vmax.f32 %v337, 0.0
  %v354 = vmax.f32 %v338, 0.0
  %v355 = vmax.f32 %v339, 0.0
  %v356 = vmax.f32 %v340, 0.0
  %v357 = vmax.f32 %v341, 0.0
  %v358 = vmax.f32 %v342, 0.0
  %v359 = vmax.f32 %v343, 0.0
  %v360 = vmax.f32 %v344, 0.0
  %v361 = vmax.f32 %v345, 0.0
  %v362 = vmax.f32 %v346, 0.0
  %v363 = vld [vmem:[%s2] sm:$0xf]
  %v364 = vld [vmem:[%s2 + $0x4] sm:$0xf]
  %v365 = vld [vmem:[%s2 + $0x8] sm:$0xf]
  %v366 = vld [vmem:[%s2 + $0xc] sm:$0xf]
  %v367 = vld [vmem:[%s2 + $0x10] sm:$0xf]
  %v368 = vld [vmem:[%s2 + $0x14] sm:$0xf]
  %v369 = vld [vmem:[%s2 + $0x18] sm:$0xf]
  %v370 = vld [vmem:[%s2 + $0x1c] sm:$0xf]
  %v371 = vld [vmem:[%s2 + $0x20] sm:$0xf]
  %v372 = vld [vmem:[%s2 + $0x24] sm:$0xf]
  %v373 = vld [vmem:[%s2 + $0x28] sm:$0xf]
  %v374 = vld [vmem:[%s2 + $0x2c] sm:$0xf]
  %v375 = vld [vmem:[%s2 + $0x30] sm:$0xf]
  %v376 = vld [vmem:[%s2 + $0x34] sm:$0xf]
  %v377 = vld [vmem:[%s2 + $0x38] sm:$0xf]
  %v378 = vld [vmem:[%s2 + $0x3c] sm:$0xf]
  %v379 = vpack.c.bf16 %v348, %v347
  %v380 = vpack.c.bf16 %v350, %v349
  %v381 = vpack.c.bf16 %v352, %v351
  %v382 = vpack.c.bf16 %v354, %v353
  %v383 = vpack.c.bf16 %v356, %v355
  %v384 = vpack.c.bf16 %v358, %v357
  %v385 = vpack.c.bf16 %v360, %v359
  %v386 = vpack.c.bf16 %v362, %v361
  %387 = vset.pattern.permute.xlu0 1
  %388 = vperm.xlu0 %387, %v35
  %v389 = vpop.permute.xlu0 %388
  %391 = vset.pattern.permute.xlu0 1
  %392 = vperm.xlu0 %391, %v36
  %v393 = vpop.permute.xlu0 %392
  %395 = vset.pattern.permute.xlu0 1
  %396 = vperm.xlu0 %395, %v37
  %v397 = vpop.permute.xlu0 %396
  %399 = vset.pattern.permute.xlu0 1
  %400 = vperm.xlu0 %399, %v38
  %v401 = vpop.permute.xlu0 %400
  %403 = vset.pattern.permute.xlu0 1
  %404 = vperm.xlu0 %403, %v39
  %v405 = vpop.permute.xlu0 %404
  %407 = vset.pattern.permute.xlu0 1
  %408 = vperm.xlu0 %407, %v40
  %v409 = vpop.permute.xlu0 %408
  %411 = vset.pattern.permute.xlu0 1
  %412 = vperm.xlu0 %411, %v41
  %v413 = vpop.permute.xlu0 %412
  %415 = vset.pattern.permute.xlu0 1
  %416 = vperm.xlu0 %415, %v42
  %v417 = vpop.permute.xlu0 %416
  %419 = vset.pattern.permute.xlu0 1
  %420 = vperm.xlu0 %419, %v43
  %v421 = vpop.permute.xlu0 %420
  %423 = vset.pattern.permute.xlu0 1
  %424 = vperm.xlu0 %423, %v44
  %v425 = vpop.permute.xlu0 %424
  %427 = vset.pattern.permute.xlu0 1
  %428 = vperm.xlu0 %427, %v45
  %v429 = vpop.permute.xlu0 %428
  %431 = vset.pattern.permute.xlu0 1
  %432 = vperm.xlu0 %431, %v46
  %v433 = vpop.permute.xlu0 %432
  %435 = vset.pattern.permute.xlu0 1
  %436 = vperm.xlu0 %435, %v47
  %v437 = vpop.permute.xlu0 %436
  %439 = vset.pattern.permute.xlu0 1
  %440 = vperm.xlu0 %439, %v48
  %v441 = vpop.permute.xlu0 %440
  %443 = vset.pattern.permute.xlu0 1
  %444 = vperm.xlu0 %443, %v49
  %v445 = vpop.permute.xlu0 %444
  %447 = vset.pattern.permute.xlu0 1
  %448 = vperm.xlu0 %447, %v50
  %v449 = vpop.permute.xlu0 %448
  %v467 = vunpack.c.l.b16 %v363
  %v468 = vunpack.c.l.b16 %v364
  %v469 = vunpack.c.l.b16 %v365
  %v470 = vunpack.c.l.b16 %v366
  %v471 = vunpack.c.l.b16 %v367
  %v472 = vunpack.c.l.b16 %v368
  %v473 = vunpack.c.l.b16 %v369
  %v474 = vunpack.c.l.b16 %v370
  %v475 = vunpack.c.l.b16 %v371
  %v476 = vunpack.c.l.b16 %v372
  %v477 = vunpack.c.l.b16 %v373
  %v478 = vunpack.c.l.b16 %v374
  %v479 = vunpack.c.l.b16 %v375
  %v480 = vunpack.c.l.b16 %v376
  %v481 = vunpack.c.l.b16 %v377
  %v482 = vunpack.c.l.b16 %v378
  %v483 = vpack.c.b16 %v468, %v467
  %v484 = vpack.c.b16 %v470, %v469
  %v485 = vpack.c.b16 %v472, %v471
  %v486 = vpack.c.b16 %v474, %v473
  %v487 = vpack.c.b16 %v476, %v475
  %v488 = vpack.c.b16 %v478, %v477
  %v489 = vpack.c.b16 %v480, %v479
  %v490 = vpack.c.b16 %v482, %v481
  %499 = vmatprep.subr.bf16.mxu0 0
  %500 = vmatpush1.bf16.msra.mxu0 %v386
  %501 = vmatprep.subr.bf16.mxu0 0
  %502 = vmatpush1.bf16.msra.mxu0 %v385
  %503 = vmatprep.subr.bf16.mxu0 0
  %504 = vmatpush1.bf16.msra.mxu0 %v384
  %505 = vmatprep.subr.bf16.mxu0 0
  %506 = vmatpush1.bf16.msra.mxu0 %v383
  %507 = vmatprep.subr.bf16.mxu0 0
  %508 = vmatpush1.bf16.msra.mxu0 %v382
  %509 = vmatprep.subr.bf16.mxu0 0
  %510 = vmatpush1.bf16.msra.mxu0 %v381
  %511 = vmatprep.subr.bf16.mxu0 0
  %512 = vmatpush1.bf16.msra.mxu0 %v380
  %513 = vmatprep.subr.bf16.mxu0 0
  %514 = vmatpush1.bf16.msra.mxu0 %v379
  %515 = vmatprep.subr.bf16.mxu0 0
  %516 = vmatpush2.bf16.msra.mxu0 0
  %517 = vmatprep.subr.bf16.mxu0 0
  %518 = vmatpush2.bf16.msra.mxu0 0
  %519 = vmatprep.subr.bf16.mxu0 0
  %520 = vmatpush2.bf16.msra.mxu0 0
  %521 = vmatprep.subr.bf16.mxu0 0
  %522 = vmatpush2.bf16.msra.mxu0 0
  %523 = vmatprep.subr.bf16.mxu0 0
  %524 = vmatpush2.bf16.msra.mxu0 0
  %525 = vmatprep.subr.bf16.mxu0 0
  %526 = vmatpush2.bf16.msra.mxu0 0
  %527 = vmatprep.subr.bf16.mxu0 0
  %528 = vmatpush2.bf16.msra.mxu0 0
  %529 = vmatprep.subr.bf16.mxu0 0
  %530 = vmatpush2.bf16.msra.mxu0 0
  %531 = vmatprep.mubr.bf16.mxu0 0
  %532 = vmatmul.mubr.bf16.gmra.mxu0 %v483
  %v533 = vpop.f32.mrf.mxu0
  %v534 = vadd.f32 %v389, %v533
  %v535 = vpop.f32.mrf.mxu0
  %v536 = vpop.f32.mrf.mxu0
  %v537 = vadd.f32 %v393, %v536
  %v538 = vpop.f32.mrf.mxu0
  %539 = vmatprep.mubr.bf16.mxu0 0
  %540 = vmatmul.mubr.bf16.gmra.mxu0 %v484
  %v541 = vpop.f32.mrf.mxu0
  %v542 = vadd.f32 %v397, %v541
  %v543 = vpop.f32.mrf.mxu0
  %v544 = vpop.f32.mrf.mxu0
  %v545 = vadd.f32 %v401, %v544
  %v546 = vpop.f32.mrf.mxu0
  %547 = vmatprep.mubr.bf16.mxu0 0
  %548 = vmatmul.mubr.bf16.gmra.mxu0 %v485
  %v549 = vpop.f32.mrf.mxu0
  %v550 = vadd.f32 %v405, %v549
  %v551 = vpop.f32.mrf.mxu0
  %v552 = vpop.f32.mrf.mxu0
  %v553 = vadd.f32 %v409, %v552
  %v554 = vpop.f32.mrf.mxu0
  %555 = vmatprep.mubr.bf16.mxu0 0
  %556 = vmatmul.mubr.bf16.gmra.mxu0 %v486
  %v557 = vpop.f32.mrf.mxu0
  %v558 = vadd.f32 %v413, %v557
  %v559 = vpop.f32.mrf.mxu0
  %v560 = vpop.f32.mrf.mxu0
  %v561 = vadd.f32 %v417, %v560
  %v562 = vpop.f32.mrf.mxu0
  %563 = vmatprep.mubr.bf16.mxu0 0
  %564 = vmatmul.mubr.bf16.gmra.mxu0 %v487
  %v565 = vpop.f32.mrf.mxu0
  %v566 = vadd.f32 %v421, %v565
  %v567 = vpop.f32.mrf.mxu0
  %v568 = vpop.f32.mrf.mxu0
  %v569 = vadd.f32 %v425, %v568
  %v570 = vpop.f32.mrf.mxu0
  %571 = vmatprep.mubr.bf16.mxu0 0
  %572 = vmatmul.mubr.bf16.gmra.mxu0 %v488
  %v573 = vpop.f32.mrf.mxu0
  %v574 = vadd.f32 %v429, %v573
  %v575 = vpop.f32.mrf.mxu0
  %v576 = vpop.f32.mrf.mxu0
  %v577 = vadd.f32 %v433, %v576
  %v578 = vpop.f32.mrf.mxu0
  %579 = vmatprep.mubr.bf16.mxu0 0
  %580 = vmatmul.mubr.bf16.gmra.mxu0 %v489
  %v581 = vpop.f32.mrf.mxu0
  %v582 = vadd.f32 %v437, %v581
  %v583 = vpop.f32.mrf.mxu0
  %v584 = vpop.f32.mrf.mxu0
  %v585 = vadd.f32 %v441, %v584
  %v586 = vpop.f32.mrf.mxu0
  %587 = vmatprep.mubr.bf16.mxu0 0
  %588 = vmatmul.mubr.bf16.gmra.mxu0 %v490
  %v589 = vpop.f32.mrf.mxu0
  %v590 = vadd.f32 %v445, %v589
  %v591 = vpop.f32.mrf.mxu0
  %v592 = vpop.f32.mrf.mxu0
  %v593 = vadd.f32 %v449, %v592
  %v594 = vpop.f32.mrf.mxu0
  %595 = vdwg.mxu0
  %v596 = vmax.f32 %v534, 0.0
  %v597 = vmax.f32 %v537, 0.0
  %v598 = vmax.f32 %v542, 0.0
  %v599 = vmax.f32 %v545, 0.0
  %v600 = vmax.f32 %v550, 0.0
  %v601 = vmax.f32 %v553, 0.0
  %v602 = vmax.f32 %v558, 0.0
  %v603 = vmax.f32 %v561, 0.0
  %v604 = vmax.f32 %v566, 0.0
  %v605 = vmax.f32 %v569, 0.0
  %v606 = vmax.f32 %v574, 0.0
  %v607 = vmax.f32 %v577, 0.0
  %v608 = vmax.f32 %v582, 0.0
  %v609 = vmax.f32 %v585, 0.0
  %v610 = vmax.f32 %v590, 0.0
  %v611 = vmax.f32 %v593, 0.0
  %s612 = scalar_lea.vmem %s2, 64
  %v613 = vld [vmem:[%s612] sm:$0xf]
  %v614 = vld [vmem:[%s612 + $0x4] sm:$0xf]
  %v615 = vld [vmem:[%s612 + $0x8] sm:$0xf]
  %v616 = vld [vmem:[%s612 + $0xc] sm:$0xf]
  %v617 = vld [vmem:[%s612 + $0x10] sm:$0xf]
  %v618 = vld [vmem:[%s612 + $0x14] sm:$0xf]
  %v619 = vld [vmem:[%s612 + $0x18] sm:$0xf]
  %v620 = vld [vmem:[%s612 + $0x1c] sm:$0xf]
  %v621 = vld [vmem:[%s612 + $0x20] sm:$0xf]
  %v622 = vld [vmem:[%s612 + $0x24] sm:$0xf]
  %v623 = vld [vmem:[%s612 + $0x28] sm:$0xf]
  %v624 = vld [vmem:[%s612 + $0x2c] sm:$0xf]
  %v625 = vld [vmem:[%s612 + $0x30] sm:$0xf]
  %v626 = vld [vmem:[%s612 + $0x34] sm:$0xf]
  %v627 = vld [vmem:[%s612 + $0x38] sm:$0xf]
  %v628 = vld [vmem:[%s612 + $0x3c] sm:$0xf]
  %v629 = vpack.c.bf16 %v597, %v596
  %v630 = vpack.c.bf16 %v599, %v598
  %v631 = vpack.c.bf16 %v601, %v600
  %v632 = vpack.c.bf16 %v603, %v602
  %v633 = vpack.c.bf16 %v605, %v604
  %v634 = vpack.c.bf16 %v607, %v606
  %v635 = vpack.c.bf16 %v609, %v608
  %v636 = vpack.c.bf16 %v611, %v610
  %637 = vset.pattern.permute.xlu0 2
  %638 = vperm.xlu0 %637, %v35
  %v639 = vpop.permute.xlu0 %638
  %641 = vset.pattern.permute.xlu0 2
  %642 = vperm.xlu0 %641, %v36
  %v643 = vpop.permute.xlu0 %642
  %645 = vset.pattern.permute.xlu0 2
  %646 = vperm.xlu0 %645, %v37
  %v647 = vpop.permute.xlu0 %646
  %649 = vset.pattern.permute.xlu0 2
  %650 = vperm.xlu0 %649, %v38
  %v651 = vpop.permute.xlu0 %650
  %653 = vset.pattern.permute.xlu0 2
  %654 = vperm.xlu0 %653, %v39
  %v655 = vpop.permute.xlu0 %654
  %657 = vset.pattern.permute.xlu0 2
  %658 = vperm.xlu0 %657, %v40
  %v659 = vpop.permute.xlu0 %658
  %661 = vset.pattern.permute.xlu0 2
  %662 = vperm.xlu0 %661, %v41
  %v663 = vpop.permute.xlu0 %662
  %665 = vset.pattern.permute.xlu0 2
  %666 = vperm.xlu0 %665, %v42
  %v667 = vpop.permute.xlu0 %666
  %669 = vset.pattern.permute.xlu0 2
  %670 = vperm.xlu0 %669, %v43
  %v671 = vpop.permute.xlu0 %670
  %673 = vset.pattern.permute.xlu0 2
  %674 = vperm.xlu0 %673, %v44
  %v675 = vpop.permute.xlu0 %674
  %677 = vset.pattern.permute.xlu0 2
  %678 = vperm.xlu0 %677, %v45
  %v679 = vpop.permute.xlu0 %678
  %681 = vset.pattern.permute.xlu0 2
  %682 = vperm.xlu0 %681, %v46
  %v683 = vpop.permute.xlu0 %682
  %685 = vset.pattern.permute.xlu0 2
  %686 = vperm.xlu0 %685, %v47
  %v687 = vpop.permute.xlu0 %686
  %689 = vset.pattern.permute.xlu0 2
  %690 = vperm.xlu0 %689, %v48
  %v691 = vpop.permute.xlu0 %690
  %693 = vset.pattern.permute.xlu0 2
  %694 = vperm.xlu0 %693, %v49
  %v695 = vpop.permute.xlu0 %694
  %697 = vset.pattern.permute.xlu0 2
  %698 = vperm.xlu0 %697, %v50
  %v699 = vpop.permute.xlu0 %698
  %v717 = vunpack.c.l.b16 %v613
  %v718 = vunpack.c.l.b16 %v614
  %v719 = vunpack.c.l.b16 %v615
  %v720 = vunpack.c.l.b16 %v616
  %v721 = vunpack.c.l.b16 %v617
  %v722 = vunpack.c.l.b16 %v618
  %v723 = vunpack.c.l.b16 %v619
  %v724 = vunpack.c.l.b16 %v620
  %v725 = vunpack.c.l.b16 %v621
  %v726 = vunpack.c.l.b16 %v622
  %v727 = vunpack.c.l.b16 %v623
  %v728 = vunpack.c.l.b16 %v624
  %v729 = vunpack.c.l.b16 %v625
  %v730 = vunpack.c.l.b16 %v626
  %v731 = vunpack.c.l.b16 %v627
  %v732 = vunpack.c.l.b16 %v628
  %v733 = vpack.c.b16 %v718, %v717
  %v734 = vpack.c.b16 %v720, %v719
  %v735 = vpack.c.b16 %v722, %v721
  %v736 = vpack.c.b16 %v724, %v723
  %v737 = vpack.c.b16 %v726, %v725
  %v738 = vpack.c.b16 %v728, %v727
  %v739 = vpack.c.b16 %v730, %v729
  %v740 = vpack.c.b16 %v732, %v731
  %749 = vmatprep.subr.bf16.mxu0 0
  %750 = vmatpush1.bf16.msra.mxu0 %v636
  %751 = vmatprep.subr.bf16.mxu0 0
  %752 = vmatpush1.bf16.msra.mxu0 %v635
  %753 = vmatprep.subr.bf16.mxu0 0
  %754 = vmatpush1.bf16.msra.mxu0 %v634
  %755 = vmatprep.subr.bf16.mxu0 0
  %756 = vmatpush1.bf16.msra.mxu0 %v633
  %757 = vmatprep.subr.bf16.mxu0 0
  %758 = vmatpush1.bf16.msra.mxu0 %v632
  %759 = vmatprep.subr.bf16.mxu0 0
  %760 = vmatpush1.bf16.msra.mxu0 %v631
  %761 = vmatprep.subr.bf16.mxu0 0
  %762 = vmatpush1.bf16.msra.mxu0 %v630
  %763 = vmatprep.subr.bf16.mxu0 0
  %764 = vmatpush1.bf16.msra.mxu0 %v629
  %765 = vmatprep.subr.bf16.mxu0 0
  %766 = vmatpush2.bf16.msra.mxu0 0
  %767 = vmatprep.subr.bf16.mxu0 0
  %768 = vmatpush2.bf16.msra.mxu0 0
  %769 = vmatprep.subr.bf16.mxu0 0
  %770 = vmatpush2.bf16.msra.mxu0 0
  %771 = vmatprep.subr.bf16.mxu0 0
  %772 = vmatpush2.bf16.msra.mxu0 0
  %773 = vmatprep.subr.bf16.mxu0 0
  %774 = vmatpush2.bf16.msra.mxu0 0
  %775 = vmatprep.subr.bf16.mxu0 0
  %776 = vmatpush2.bf16.msra.mxu0 0
  %777 = vmatprep.subr.bf16.mxu0 0
  %778 = vmatpush2.bf16.msra.mxu0 0
  %779 = vmatprep.subr.bf16.mxu0 0
  %780 = vmatpush2.bf16.msra.mxu0 0
  %781 = vmatprep.mubr.bf16.mxu0 0
  %782 = vmatmul.mubr.bf16.gmra.mxu0 %v733
  %v783 = vpop.f32.mrf.mxu0
  %v784 = vadd.f32 %v639, %v783
  %v785 = vpop.f32.mrf.mxu0
  %v786 = vpop.f32.mrf.mxu0
  %v787 = vadd.f32 %v643, %v786
  %v788 = vpop.f32.mrf.mxu0
  %789 = vmatprep.mubr.bf16.mxu0 0
  %790 = vmatmul.mubr.bf16.gmra.mxu0 %v734
  %v791 = vpop.f32.mrf.mxu0
  %v792 = vadd.f32 %v647, %v791
  %v793 = vpop.f32.mrf.mxu0
  %v794 = vpop.f32.mrf.mxu0
  %v795 = vadd.f32 %v651, %v794
  %v796 = vpop.f32.mrf.mxu0
  %797 = vmatprep.mubr.bf16.mxu0 0
  %798 = vmatmul.mubr.bf16.gmra.mxu0 %v735
  %v799 = vpop.f32.mrf.mxu0
  %v800 = vadd.f32 %v655, %v799
  %v801 = vpop.f32.mrf.mxu0
  %v802 = vpop.f32.mrf.mxu0
  %v803 = vadd.f32 %v659, %v802
  %v804 = vpop.f32.mrf.mxu0
  %805 = vmatprep.mubr.bf16.mxu0 0
  %806 = vmatmul.mubr.bf16.gmra.mxu0 %v736
  %v807 = vpop.f32.mrf.mxu0
  %v808 = vadd.f32 %v663, %v807
  %v809 = vpop.f32.mrf.mxu0
  %v810 = vpop.f32.mrf.mxu0
  %v811 = vadd.f32 %v667, %v810
  %v812 = vpop.f32.mrf.mxu0
  %813 = vmatprep.mubr.bf16.mxu0 0
  %814 = vmatmul.mubr.bf16.gmra.mxu0 %v737
  %v815 = vpop.f32.mrf.mxu0
  %v816 = vadd.f32 %v671, %v815
  %v817 = vpop.f32.mrf.mxu0
  %v818 = vpop.f32.mrf.mxu0
  %v819 = vadd.f32 %v675, %v818
  %v820 = vpop.f32.mrf.mxu0
  %821 = vmatprep.mubr.bf16.mxu0 0
  %822 = vmatmul.mubr.bf16.gmra.mxu0 %v738
  %v823 = vpop.f32.mrf.mxu0
  %v824 = vadd.f32 %v679, %v823
  %v825 = vpop.f32.mrf.mxu0
  %v826 = vpop.f32.mrf.mxu0
  %v827 = vadd.f32 %v683, %v826
  %v828 = vpop.f32.mrf.mxu0
  %829 = vmatprep.mubr.bf16.mxu0 0
  %830 = vmatmul.mubr.bf16.gmra.mxu0 %v739
  %v831 = vpop.f32.mrf.mxu0
  %v832 = vadd.f32 %v687, %v831
  %v833 = vpop.f32.mrf.mxu0
  %v834 = vpop.f32.mrf.mxu0
  %v835 = vadd.f32 %v691, %v834
  %v836 = vpop.f32.mrf.mxu0
  %837 = vmatprep.mubr.bf16.mxu0 0
  %838 = vmatmul.mubr.bf16.gmra.mxu0 %v740
  %v839 = vpop.f32.mrf.mxu0
  %v840 = vadd.f32 %v695, %v839
  %v841 = vpop.f32.mrf.mxu0
  %v842 = vpop.f32.mrf.mxu0
  %v843 = vadd.f32 %v699, %v842
  %v844 = vpop.f32.mrf.mxu0
  %845 = vdwg.mxu0
  %v846 = vmax.f32 %v784, 0.0
  %v847 = vmax.f32 %v787, 0.0
  %v848 = vmax.f32 %v792, 0.0
  %v849 = vmax.f32 %v795, 0.0
  %v850 = vmax.f32 %v800, 0.0
  %v851 = vmax.f32 %v803, 0.0
  %v852 = vmax.f32 %v808, 0.0
  %v853 = vmax.f32 %v811, 0.0
  %v854 = vmax.f32 %v816, 0.0
  %v855 = vmax.f32 %v819, 0.0
  %v856 = vmax.f32 %v824, 0.0
  %v857 = vmax.f32 %v827, 0.0
  %v858 = vmax.f32 %v832, 0.0
  %v859 = vmax.f32 %v835, 0.0
  %v860 = vmax.f32 %v840, 0.0
  %v861 = vmax.f32 %v843, 0.0
  %s862 = scalar_lea.vmem %s2, 128
  %v863 = vld [vmem:[%s862] sm:$0xf]
  %v864 = vld [vmem:[%s862 + $0x4] sm:$0xf]
  %v865 = vld [vmem:[%s862 + $0x8] sm:$0xf]
  %v866 = vld [vmem:[%s862 + $0xc] sm:$0xf]
  %v867 = vld [vmem:[%s862 + $0x10] sm:$0xf]
  %v868 = vld [vmem:[%s862 + $0x14] sm:$0xf]
  %v869 = vld [vmem:[%s862 + $0x18] sm:$0xf]
  %v870 = vld [vmem:[%s862 + $0x1c] sm:$0xf]
  %v871 = vld [vmem:[%s862 + $0x20] sm:$0xf]
  %v872 = vld [vmem:[%s862 + $0x24] sm:$0xf]
  %v873 = vld [vmem:[%s862 + $0x28] sm:$0xf]
  %v874 = vld [vmem:[%s862 + $0x2c] sm:$0xf]
  %v875 = vld [vmem:[%s862 + $0x30] sm:$0xf]
  %v876 = vld [vmem:[%s862 + $0x34] sm:$0xf]
  %v877 = vld [vmem:[%s862 + $0x38] sm:$0xf]
  %v878 = vld [vmem:[%s862 + $0x3c] sm:$0xf]
  %v879 = vpack.c.bf16 %v847, %v846
  %v880 = vpack.c.bf16 %v849, %v848
  %v881 = vpack.c.bf16 %v851, %v850
  %v882 = vpack.c.bf16 %v853, %v852
  %v883 = vpack.c.bf16 %v855, %v854
  %v884 = vpack.c.bf16 %v857, %v856
  %v885 = vpack.c.bf16 %v859, %v858
  %v886 = vpack.c.bf16 %v861, %v860
  %887 = vset.pattern.permute.xlu0 3
  %888 = vperm.xlu0 %887, %v35
  %v889 = vpop.permute.xlu0 %888
  %891 = vset.pattern.permute.xlu0 3
  %892 = vperm.xlu0 %891, %v36
  %v893 = vpop.permute.xlu0 %892
  %895 = vset.pattern.permute.xlu0 3
  %896 = vperm.xlu0 %895, %v37
  %v897 = vpop.permute.xlu0 %896
  %899 = vset.pattern.permute.xlu0 3
  %900 = vperm.xlu0 %899, %v38
  %v901 = vpop.permute.xlu0 %900
  %903 = vset.pattern.permute.xlu0 3
  %904 = vperm.xlu0 %903, %v39
  %v905 = vpop.permute.xlu0 %904
  %907 = vset.pattern.permute.xlu0 3
  %908 = vperm.xlu0 %907, %v40
  %v909 = vpop.permute.xlu0 %908
  %911 = vset.pattern.permute.xlu0 3
  %912 = vperm.xlu0 %911, %v41
  %v913 = vpop.permute.xlu0 %912
  %915 = vset.pattern.permute.xlu0 3
  %916 = vperm.xlu0 %915, %v42
  %v917 = vpop.permute.xlu0 %916
  %919 = vset.pattern.permute.xlu0 3
  %920 = vperm.xlu0 %919, %v43
  %v921 = vpop.permute.xlu0 %920
  %923 = vset.pattern.permute.xlu0 3
  %924 = vperm.xlu0 %923, %v44
  %v925 = vpop.permute.xlu0 %924
  %927 = vset.pattern.permute.xlu0 3
  %928 = vperm.xlu0 %927, %v45
  %v929 = vpop.permute.xlu0 %928
  %931 = vset.pattern.permute.xlu0 3
  %932 = vperm.xlu0 %931, %v46
  %v933 = vpop.permute.xlu0 %932
  %935 = vset.pattern.permute.xlu0 3
  %936 = vperm.xlu0 %935, %v47
  %v937 = vpop.permute.xlu0 %936
  %939 = vset.pattern.permute.xlu0 3
  %940 = vperm.xlu0 %939, %v48
  %v941 = vpop.permute.xlu0 %940
  %943 = vset.pattern.permute.xlu0 3
  %944 = vperm.xlu0 %943, %v49
  %v945 = vpop.permute.xlu0 %944
  %947 = vset.pattern.permute.xlu0 3
  %948 = vperm.xlu0 %947, %v50
  %v949 = vpop.permute.xlu0 %948
  %v967 = vunpack.c.l.b16 %v863
  %v968 = vunpack.c.l.b16 %v864
  %v969 = vunpack.c.l.b16 %v865
  %v970 = vunpack.c.l.b16 %v866
  %v971 = vunpack.c.l.b16 %v867
  %v972 = vunpack.c.l.b16 %v868
  %v973 = vunpack.c.l.b16 %v869
  %v974 = vunpack.c.l.b16 %v870
  %v975 = vunpack.c.l.b16 %v871
  %v976 = vunpack.c.l.b16 %v872
  %v977 = vunpack.c.l.b16 %v873
  %v978 = vunpack.c.l.b16 %v874
  %v979 = vunpack.c.l.b16 %v875
  %v980 = vunpack.c.l.b16 %v876
  %v981 = vunpack.c.l.b16 %v877
  %v982 = vunpack.c.l.b16 %v878
  %v983 = vpack.c.b16 %v968, %v967
  %v984 = vpack.c.b16 %v970, %v969
  %v985 = vpack.c.b16 %v972, %v971
  %v986 = vpack.c.b16 %v974, %v973
  %v987 = vpack.c.b16 %v976, %v975
  %v988 = vpack.c.b16 %v978, %v977
  %v989 = vpack.c.b16 %v980, %v979
  %v990 = vpack.c.b16 %v982, %v981
  %999 = vmatprep.subr.bf16.mxu0 0
  %1000 = vmatpush1.bf16.msra.mxu0 %v886
  %1001 = vmatprep.subr.bf16.mxu0 0
  %1002 = vmatpush1.bf16.msra.mxu0 %v885
  %1003 = vmatprep.subr.bf16.mxu0 0
  %1004 = vmatpush1.bf16.msra.mxu0 %v884
  %1005 = vmatprep.subr.bf16.mxu0 0
  %1006 = vmatpush1.bf16.msra.mxu0 %v883
  %1007 = vmatprep.subr.bf16.mxu0 0
  %1008 = vmatpush1.bf16.msra.mxu0 %v882
  %1009 = vmatprep.subr.bf16.mxu0 0
  %1010 = vmatpush1.bf16.msra.mxu0 %v881
  %1011 = vmatprep.subr.bf16.mxu0 0
  %1012 = vmatpush1.bf16.msra.mxu0 %v880
  %1013 = vmatprep.subr.bf16.mxu0 0
  %1014 = vmatpush1.bf16.msra.mxu0 %v879
  %1015 = vmatprep.subr.bf16.mxu0 0
  %1016 = vmatpush2.bf16.msra.mxu0 0
  %1017 = vmatprep.subr.bf16.mxu0 0
  %1018 = vmatpush2.bf16.msra.mxu0 0
  %1019 = vmatprep.subr.bf16.mxu0 0
  %1020 = vmatpush2.bf16.msra.mxu0 0
  %1021 = vmatprep.subr.bf16.mxu0 0
  %1022 = vmatpush2.bf16.msra.mxu0 0
  %1023 = vmatprep.subr.bf16.mxu0 0
  %1024 = vmatpush2.bf16.msra.mxu0 0
  %1025 = vmatprep.subr.bf16.mxu0 0
  %1026 = vmatpush2.bf16.msra.mxu0 0
  %1027 = vmatprep.subr.bf16.mxu0 0
  %1028 = vmatpush2.bf16.msra.mxu0 0
  %1029 = vmatprep.subr.bf16.mxu0 0
  %1030 = vmatpush2.bf16.msra.mxu0 0
  %1031 = vmatprep.mubr.bf16.mxu0 0
  %1032 = vmatmul.mubr.bf16.gmra.mxu0 %v983
  %v1033 = vpop.f32.mrf.mxu0
  %v1034 = vadd.f32 %v889, %v1033
  %v1035 = vpop.f32.mrf.mxu0
  %v1036 = vpop.f32.mrf.mxu0
  %v1037 = vadd.f32 %v893, %v1036
  %v1038 = vpop.f32.mrf.mxu0
  %1039 = vmatprep.mubr.bf16.mxu0 0
  %1040 = vmatmul.mubr.bf16.gmra.mxu0 %v984
  %v1041 = vpop.f32.mrf.mxu0
  %v1042 = vadd.f32 %v897, %v1041
  %v1043 = vpop.f32.mrf.mxu0
  %v1044 = vpop.f32.mrf.mxu0
  %v1045 = vadd.f32 %v901, %v1044
  %v1046 = vpop.f32.mrf.mxu0
  %1047 = vmatprep.mubr.bf16.mxu0 0
  %1048 = vmatmul.mubr.bf16.gmra.mxu0 %v985
  %v1049 = vpop.f32.mrf.mxu0
  %v1050 = vadd.f32 %v905, %v1049
  %v1051 = vpop.f32.mrf.mxu0
  %v1052 = vpop.f32.mrf.mxu0
  %v1053 = vadd.f32 %v909, %v1052
  %v1054 = vpop.f32.mrf.mxu0
  %1055 = vmatprep.mubr.bf16.mxu0 0
  %1056 = vmatmul.mubr.bf16.gmra.mxu0 %v986
  %v1057 = vpop.f32.mrf.mxu0
  %v1058 = vadd.f32 %v913, %v1057
  %v1059 = vpop.f32.mrf.mxu0
  %v1060 = vpop.f32.mrf.mxu0
  %v1061 = vadd.f32 %v917, %v1060
  %v1062 = vpop.f32.mrf.mxu0
  %1063 = vmatprep.mubr.bf16.mxu0 0
  %1064 = vmatmul.mubr.bf16.gmra.mxu0 %v987
  %v1065 = vpop.f32.mrf.mxu0
  %v1066 = vadd.f32 %v921, %v1065
  %v1067 = vpop.f32.mrf.mxu0
  %v1068 = vpop.f32.mrf.mxu0
  %v1069 = vadd.f32 %v925, %v1068
  %v1070 = vpop.f32.mrf.mxu0
  %1071 = vmatprep.mubr.bf16.mxu0 0
  %1072 = vmatmul.mubr.bf16.gmra.mxu0 %v988
  %v1073 = vpop.f32.mrf.mxu0
  %v1074 = vadd.f32 %v929, %v1073
  %v1075 = vpop.f32.mrf.mxu0
  %v1076 = vpop.f32.mrf.mxu0
  %v1077 = vadd.f32 %v933, %v1076
  %v1078 = vpop.f32.mrf.mxu0
  %1079 = vmatprep.mubr.bf16.mxu0 0
  %1080 = vmatmul.mubr.bf16.gmra.mxu0 %v989
  %v1081 = vpop.f32.mrf.mxu0
  %v1082 = vadd.f32 %v937, %v1081
  %v1083 = vpop.f32.mrf.mxu0
  %v1084 = vpop.f32.mrf.mxu0
  %v1085 = vadd.f32 %v941, %v1084
  %v1086 = vpop.f32.mrf.mxu0
  %1087 = vmatprep.mubr.bf16.mxu0 0
  %1088 = vmatmul.mubr.bf16.gmra.mxu0 %v990
  %v1089 = vpop.f32.mrf.mxu0
  %v1090 = vadd.f32 %v945, %v1089
  %v1091 = vpop.f32.mrf.mxu0
  %v1092 = vpop.f32.mrf.mxu0
  %v1093 = vadd.f32 %v949, %v1092
  %v1094 = vpop.f32.mrf.mxu0
  %1095 = vdwg.mxu0
  %v1096 = vmax.f32 %v1034, 0.0
  %v1097 = vmax.f32 %v1037, 0.0
  %v1098 = vmax.f32 %v1042, 0.0
  %v1099 = vmax.f32 %v1045, 0.0
  %v1100 = vmax.f32 %v1050, 0.0
  %v1101 = vmax.f32 %v1053, 0.0
  %v1102 = vmax.f32 %v1058, 0.0
  %v1103 = vmax.f32 %v1061, 0.0
  %v1104 = vmax.f32 %v1066, 0.0
  %v1105 = vmax.f32 %v1069, 0.0
  %v1106 = vmax.f32 %v1074, 0.0
  %v1107 = vmax.f32 %v1077, 0.0
  %v1108 = vmax.f32 %v1082, 0.0
  %v1109 = vmax.f32 %v1085, 0.0
  %v1110 = vmax.f32 %v1090, 0.0
  %v1111 = vmax.f32 %v1093, 0.0
  %s1112 = scalar_lea.vmem %s2, 192
  %v1113 = vld [vmem:[%s1112] sm:$0xf]
  %v1114 = vld [vmem:[%s1112 + $0x4] sm:$0xf]
  %v1115 = vld [vmem:[%s1112 + $0x8] sm:$0xf]
  %v1116 = vld [vmem:[%s1112 + $0xc] sm:$0xf]
  %v1117 = vld [vmem:[%s1112 + $0x10] sm:$0xf]
  %v1118 = vld [vmem:[%s1112 + $0x14] sm:$0xf]
  %v1119 = vld [vmem:[%s1112 + $0x18] sm:$0xf]
  %v1120 = vld [vmem:[%s1112 + $0x1c] sm:$0xf]
  %v1121 = vld [vmem:[%s1112 + $0x20] sm:$0xf]
  %v1122 = vld [vmem:[%s1112 + $0x24] sm:$0xf]
  %v1123 = vld [vmem:[%s1112 + $0x28] sm:$0xf]
  %v1124 = vld [vmem:[%s1112 + $0x2c] sm:$0xf]
  %v1125 = vld [vmem:[%s1112 + $0x30] sm:$0xf]
  %v1126 = vld [vmem:[%s1112 + $0x34] sm:$0xf]
  %v1127 = vld [vmem:[%s1112 + $0x38] sm:$0xf]
  %v1128 = vld [vmem:[%s1112 + $0x3c] sm:$0xf]
  %v1129 = vpack.c.bf16 %v1097, %v1096
  %v1130 = vpack.c.bf16 %v1099, %v1098
  %v1131 = vpack.c.bf16 %v1101, %v1100
  %v1132 = vpack.c.bf16 %v1103, %v1102
  %v1133 = vpack.c.bf16 %v1105, %v1104
  %v1134 = vpack.c.bf16 %v1107, %v1106
  %v1135 = vpack.c.bf16 %v1109, %v1108
  %v1136 = vpack.c.bf16 %v1111, %v1110
  %v1153 = vunpack.c.l.b16 %v1113
  %v1154 = vunpack.c.l.b16 %v1114
  %v1155 = vunpack.c.l.b16 %v1115
  %v1156 = vunpack.c.l.b16 %v1116
  %v1157 = vunpack.c.l.b16 %v1117
  %v1158 = vunpack.c.l.b16 %v1118
  %v1159 = vunpack.c.l.b16 %v1119
  %v1160 = vunpack.c.l.b16 %v1120
  %v1161 = vunpack.c.l.b16 %v1121
  %v1162 = vunpack.c.l.b16 %v1122
  %v1163 = vunpack.c.l.b16 %v1123
  %v1164 = vunpack.c.l.b16 %v1124
  %v1165 = vunpack.c.l.b16 %v1125
  %v1166 = vunpack.c.l.b16 %v1126
  %v1167 = vunpack.c.l.b16 %v1127
  %v1168 = vunpack.c.l.b16 %v1128
  %v1169 = vpack.c.b16 %v1154, %v1153
  %v1170 = vpack.c.b16 %v1156, %v1155
  %v1171 = vpack.c.b16 %v1158, %v1157
  %v1172 = vpack.c.b16 %v1160, %v1159
  %v1173 = vpack.c.b16 %v1162, %v1161
  %v1174 = vpack.c.b16 %v1164, %v1163
  %v1175 = vpack.c.b16 %v1166, %v1165
  %v1176 = vpack.c.b16 %v1168, %v1167
  %1185 = vmatprep.subr.bf16.mxu0 0
  %1186 = vmatpush1.bf16.msra.mxu0 %v1136
  %1187 = vmatprep.subr.bf16.mxu0 0
  %1188 = vmatpush1.bf16.msra.mxu0 %v1135
  %1189 = vmatprep.subr.bf16.mxu0 0
  %1190 = vmatpush1.bf16.msra.mxu0 %v1134
  %1191 = vmatprep.subr.bf16.mxu0 0
  %1192 = vmatpush1.bf16.msra.mxu0 %v1133
  %1193 = vmatprep.subr.bf16.mxu0 0
  %1194 = vmatpush1.bf16.msra.mxu0 %v1132
  %1195 = vmatprep.subr.bf16.mxu0 0
  %1196 = vmatpush1.bf16.msra.mxu0 %v1131
  %1197 = vmatprep.subr.bf16.mxu0 0
  %1198 = vmatpush1.bf16.msra.mxu0 %v1130
  %1199 = vmatprep.subr.bf16.mxu0 0
  %1200 = vmatpush1.bf16.msra.mxu0 %v1129
  %1201 = vmatprep.subr.bf16.mxu0 0
  %1202 = vmatpush2.bf16.msra.mxu0 0
  %1203 = vmatprep.subr.bf16.mxu0 0
  %1204 = vmatpush2.bf16.msra.mxu0 0
  %1205 = vmatprep.subr.bf16.mxu0 0
  %1206 = vmatpush2.bf16.msra.mxu0 0
  %1207 = vmatprep.subr.bf16.mxu0 0
  %1208 = vmatpush2.bf16.msra.mxu0 0
  %1209 = vmatprep.subr.bf16.mxu0 0
  %1210 = vmatpush2.bf16.msra.mxu0 0
  %1211 = vmatprep.subr.bf16.mxu0 0
  %1212 = vmatpush2.bf16.msra.mxu0 0
  %1213 = vmatprep.subr.bf16.mxu0 0
  %1214 = vmatpush2.bf16.msra.mxu0 0
  %1215 = vmatprep.subr.bf16.mxu0 0
  %1216 = vmatpush2.bf16.msra.mxu0 0
  %1217 = vmatprep.mubr.bf16.mxu0 0
  %1218 = vmatmul.mubr.bf16.gmra.mxu0 %v1169
  %v1219 = vpop.f32.mrf.mxu0
  %v1220 = vadd.f32 0.0, %v1219
  %v1221 = vpop.f32.mrf.mxu0
  %v1222 = vpop.f32.mrf.mxu0
  %v1223 = vpop.f32.mrf.mxu0
  %1224 = vmatprep.mubr.bf16.mxu0 0
  %1225 = vmatmul.mubr.bf16.gmra.mxu0 %v1170
  %v1226 = vpop.f32.mrf.mxu0
  %v1227 = vpop.f32.mrf.mxu0
  %v1228 = vpop.f32.mrf.mxu0
  %v1229 = vpop.f32.mrf.mxu0
  %1230 = vmatprep.mubr.bf16.mxu0 0
  %1231 = vmatmul.mubr.bf16.gmra.mxu0 %v1171
  %v1232 = vpop.f32.mrf.mxu0
  %v1233 = vpop.f32.mrf.mxu0
  %v1234 = vpop.f32.mrf.mxu0
  %v1235 = vpop.f32.mrf.mxu0
  %1236 = vmatprep.mubr.bf16.mxu0 0
  %1237 = vmatmul.mubr.bf16.gmra.mxu0 %v1172
  %v1238 = vpop.f32.mrf.mxu0
  %v1239 = vpop.f32.mrf.mxu0
  %v1240 = vpop.f32.mrf.mxu0
  %v1241 = vpop.f32.mrf.mxu0
  %1242 = vmatprep.mubr.bf16.mxu0 0
  %1243 = vmatmul.mubr.bf16.gmra.mxu0 %v1173
  %v1244 = vpop.f32.mrf.mxu0
  %v1245 = vpop.f32.mrf.mxu0
  %v1246 = vpop.f32.mrf.mxu0
  %v1247 = vpop.f32.mrf.mxu0
  %1248 = vmatprep.mubr.bf16.mxu0 0
  %1249 = vmatmul.mubr.bf16.gmra.mxu0 %v1174
  %v1250 = vpop.f32.mrf.mxu0
  %v1251 = vpop.f32.mrf.mxu0
  %v1252 = vpop.f32.mrf.mxu0
  %v1253 = vpop.f32.mrf.mxu0
  %1254 = vmatprep.mubr.bf16.mxu0 0
  %1255 = vmatmul.mubr.bf16.gmra.mxu0 %v1175
  %v1256 = vpop.f32.mrf.mxu0
  %v1257 = vpop.f32.mrf.mxu0
  %v1258 = vpop.f32.mrf.mxu0
  %v1259 = vpop.f32.mrf.mxu0
  %1260 = vmatprep.mubr.bf16.mxu0 0
  %1261 = vmatmul.mubr.bf16.gmra.mxu0 %v1176
  %v1262 = vpop.f32.mrf.mxu0
  %v1263 = vpop.f32.mrf.mxu0
  %v1264 = vpop.f32.mrf.mxu0
  %v1265 = vpop.f32.mrf.mxu0
  %1266 = vdwg.mxu0
  %1267 = vset.pattern.permute.xlu0 4
  %1268 = vperm.xlu0 %1267, %v35
  %v1269 = vpop.permute.xlu0 %1268
  %v1271 = vadd.f32 %v1220, %v1269
  %1272 = vst [vmem:[%s4] sm:$0xf] %v1271
  // Predicated region
  $region18: #{expert_model_forward.1} parent=0 // pred_check
    _
  $region19: #{expert_model_forward.1} parent=0 // pred_check_branch
    %1274 = sbr.rel (0) target = $region21
  $region20: #{expert_model_forward.1} parent=0 // pred_region
    _
  $region21: #{expert_model_forward.1} parent=0 // pred_fallthru
    _
  // Predicated region
  $region22: #{expert_model_forward.1} parent=0 // pred_check
    _
  $region23: #{expert_model_forward.1} parent=0 // pred_check_branch
    %1276 = sbr.rel (0) target = $region25
  $region24: #{expert_model_forward.1} parent=0 // pred_region
    _
  $region25: #{expert_model_forward.1} parent=0 // pred_fallthru
    _

</llo_original>
